<compile_context>
chip_gen: v6e
topology: v6e:2x2x1
jax: 0.10.0
libtpu: 0.0.40
codegen_flags: <defaults>
</compile_context>

<pallas_src>
import functools
import math

import jax
import jax.numpy as jnp
import numpy as np
from jax import lax
from jax.experimental import pallas as pl
from jax.experimental.pallas import tpu as pltpu


def _ceil8(n):
    return -(-n // 8) * 8


def _make_scatter(K, stride, L_in):
    """Dcat[k*L_in + m, n] = 1 iff n == m*stride - (K//2) + k, with n in [0, L_in*stride).

    Realizes ConvTranspose1d(stride, padding=K//2, output_padding=stride-1) as a matmul
    on the MXU (no host-side zero-dilation / padding glue)."""
    p = K // 2
    L_out = L_in * stride
    k = np.arange(K)[:, None]
    m = np.arange(L_in)[None, :]
    n = (m * stride - p + k).reshape(-1)                      # (K*L_in,)
    return (n[:, None] == np.arange(L_out)[None, :]).astype(np.float32)


def _fused_decoder_kernel(*refs, layer_meta, bpc, eps):
    """All decoder stages for `bpc` batch elements in one invocation.

    refs = (x_ref, [wbig_ref, dcat_ref] per layer, aux_ref, out_ref)
      x_ref   : (1, bpc*T, Cin)        natural (batch,time)-major input
      wbig    : (K*Cout_pad, Cin_pad)  all K taps stacked, channels reordered/padded
      dcat    : (K*L_in, L_out)        0/1 scatter matrix (stride / pad / out-pad)
      aux_ref : (sum Cout_pad, 4)      [bias | gamma | beta | 0] for every layer
      out_ref : (1, bpc, Cout_f*L_f)   lane-dense output rows
    """
    x_ref = refs[0]
    out_ref = refs[-1]
    aux_ref = refs[-2]
    layer_refs = refs[1:-2]

    x2d = x_ref[0, :, :].astype(jnp.float32)        # (bpc*T, Cin), rows (b, m)
    act_p = None                                    # (C_prev_pad, bpc*L), cols (b, m)
    inv_sqrt2 = 1.0 / math.sqrt(2.0)
    n_layers = len(layer_meta)

    for li, (K, Coutp, Cout_real, G, cpg, L_in, L_out, has_gn, aux_off) in enumerate(layer_meta):
        wbig = layer_refs[2 * li][...]
        dcat = layer_refs[2 * li + 1][...]
        aux1 = aux_ref[aux_off:aux_off + Coutp, :]           # (Coutp, 4), 8-aligned slice
        aux = jnp.concatenate([aux1] * bpc, axis=0)          # (bpc*Coutp, 4)

        # ---- ConvTranspose1d matmul #1: all K taps, whole batch on lanes ----------
        if li == 0:
            # contract the channel axis of BOTH operands -> no input transpose needed
            z = lax.dot_general(wbig, x2d, (((1,), (1,)), ((), ())),
                                preferred_element_type=jnp.float32)
        else:
            z = jnp.dot(wbig, act_p, preferred_element_type=jnp.float32)
        # z: (K*Coutp, bpc*L_in), columns ordered (b, m)

        # ---- rearrange to batch-on-sublanes (all sublane starts 8-aligned) --------
        zrows = []
        for b in range(bpc):
            zrows.append(jnp.concatenate(
                [z[k * Coutp:(k + 1) * Coutp, b * L_in:(b + 1) * L_in]
                 for k in range(K)], axis=1))
        zcat = jnp.concatenate(zrows, axis=0)                # (bpc*Coutp, K*L_in)

        # ---- matmul #2: 0/1 scatter does stride/padding/output_padding on the MXU -
        y = jnp.dot(zcat, dcat, preferred_element_type=jnp.float32)
        y = y + aux[:, 0:1]                                   # conv bias

        if has_gn:
            # TODO(synk): nn.Dropout is treated as inference-mode identity.
            # GroupNorm: channels were packed so the cpg members of a group sit exactly
            # G rows apart -> per-group sums are 8-aligned row-block adds (VPU only,
            # no MXU stats matmul).
            s1 = jnp.sum(y, axis=-1, keepdims=True)
            s2 = jnp.sum(y * y, axis=-1, keepdims=True)
            s12 = jnp.concatenate([s1, s2], axis=1)           # (bpc*Coutp, 2)
            parts = []
            for b in range(bpc):
                blk = s12[b * Coutp:(b + 1) * Coutp, :]
                gs = blk[0:G, :]
                for j in range(1, cpg):
                    gs = gs + blk[j * G:(j + 1) * G, :]
                pieces = [gs] * cpg
                if Coutp > cpg * G:                           # zero pad channels
                    pieces.append(blk[cpg * G:Coutp, :])
                parts.append(jnp.concatenate(pieces, axis=0))
            gsum = jnp.concatenate(parts, axis=0)             # (bpc*Coutp, 2)
            n = float(cpg * L_out)
            mean = gsum[:, 0:1] / n
            var = jnp.maximum(gsum[:, 1:2] / n - mean * mean, 0.0)
            y = (y - mean) * lax.rsqrt(var + eps)
            y = y * aux[:, 1:2] + aux[:, 2:3]
            y = 0.5 * y * (1.0 + lax.erf(y * inv_sqrt2))      # exact erf GELU

        if li < n_layers - 1:
            # back to channels-on-sublanes / batch-on-lanes for the next matmul #1
            act_p = jnp.concatenate(
                [y[b * Coutp:(b + 1) * Coutp, :] for b in range(bpc)], axis=1)
        else:
            # lane-dense store: one (Cout_real*L_out)-wide row per batch element,
            # dropping the padded channel rows here.
            out_rows = []
            for b in range(bpc):
                out_rows.append(jnp.concatenate(
                    [y[b * Coutp + c:b * Coutp + c + 1, :] for c in range(Cout_real)],
                    axis=1))
            flat = jnp.concatenate(out_rows, axis=0)          # (bpc, Cout_real*L_out)
            out_ref[0, :, :] = flat.astype(out_ref.dtype)


class MAEEGConvDecoderPallas:
    """JAX/Pallas re-implementation of MAEEGConvDecoder (forward semantics)."""

    def __init__(self, input_channel, output_channel, kernel_size, upsample_size,
                 dropout, key):
        self.input_channel = input_channel
        self.output_channel = output_channel
        if not isinstance(kernel_size, (list, tuple)):
            kernel_size = [kernel_size]
        if not isinstance(upsample_size, (list, tuple)):
            upsample_size = [upsample_size]
        assert len(kernel_size) == len(upsample_size)
        kernel_size = [e if e % 2 else e + 1 for e in kernel_size]
        self.kernel_size = kernel_size[::-1]
        self.upsample_size = upsample_size[::-1]
        self.num_groups = input_channel // 2
        self.dropout = dropout  # TODO(synk): dropout is inference-mode identity here.

        # deterministic parameter init (shapes mirror the PyTorch module)
        self.params = []
        n_layers = len(self.kernel_size)
        for i, k in enumerate(self.kernel_size):
            out_c = input_channel if i != n_layers - 1 else output_channel
            key, kw, kb, kg, kgb = jax.random.split(key, 5)
            bound = 1.0 / math.sqrt(input_channel * k)
            w = jax.random.uniform(kw, (input_channel, out_c, k), jnp.float32,
                                   -bound, bound)
            b = jax.random.uniform(kb, (out_c,), jnp.float32, -bound, bound)
            if i != n_layers - 1:
                gnw = 1.0 + 0.1 * jax.random.normal(kg, (out_c,), jnp.float32)
                gnb = 0.1 * jax.random.normal(kgb, (out_c,), jnp.float32)
            else:
                gnw, gnb = None, None
            self.params.append((w, b, gnw, gnb))

        # ---- length/batch independent packed parameters (host side, once) ---------
        # Channels of GN layers are reordered into cpg "bands" of size G so that the
        # members of group g sit exactly G rows apart; every Cout is padded to a
        # multiple of 8 so all in-kernel sublane slices are tile-aligned.
        self._wbig = []
        self._layer_static = []          # (K, Coutp, Cout_real, has_gn, G, cpg, aux_off)
        aux_blocks = []
        aux_off = 0
        in_order = list(range(input_channel))
        for i in range(n_layers):
            w, b, gnw, gnb = self.params[i]
            _, Cout, K = w.shape
            has_gn = i != n_layers - 1
            G = self.num_groups
            if has_gn:
                assert Cout % G == 0
                cpg = Cout // G
                out_order = [g * cpg + j for j in range(cpg) for g in range(G)]
            else:
                cpg = 1
                out_order = list(range(Cout))
            Coutp = _ceil8(Cout)
            out_order_p = out_order + [-1] * (Coutp - Cout)

            wnp = np.asarray(w, np.float32)                  # (Cin, Cout, K)
            wbig = np.zeros((K * Coutp, len(in_order)), np.float32)
            for kk in range(K):
                for p, oc in enumerate(out_order_p):
                    if oc < 0:
                        continue
                    for q, ic in enumerate(in_order):
                        if ic < 0:
                            continue
                        wbig[kk * Coutp + p, q] = wnp[ic, oc, kk]

            aux = np.zeros((Coutp, 4), np.float32)
            bnp = np.asarray(b, np.float32)
            for p, oc in enumerate(out_order_p):
                if oc < 0:
                    continue
                aux[p, 0] = bnp[oc]
                if has_gn:
                    aux[p, 1] = float(np.asarray(gnw)[oc])
                    aux[p, 2] = float(np.asarray(gnb)[oc])

            self._wbig.append(jnp.asarray(wbig))
            aux_blocks.append(aux)
            self._layer_static.append((K, Coutp, Cout, has_gn, G, cpg, aux_off))
            aux_off += Coutp
            in_order = out_order_p

        self._aux_all = jnp.asarray(np.concatenate(aux_blocks, axis=0))
        self._dcat_cache = {}

    def __call__(self, x):
        # x: (B, T, C_in)  ->  out: (B, C_out, T * prod(upsample))
        B, T, Cin = x.shape
        assert Cin == self.input_channel
        n_layers = len(self.kernel_size)

        # v7x: 2-way parallel megacore split when the batch allows it; otherwise the
        # whole batch is fused into a single grid step (best on single-TC v5e/v6e).
        n_shards = 2 if (B % 2 == 0 and B >= 4) else 1
        bpc = B // n_shards

        # free reshape only (no host transpose): rows stay (batch, time)-major
        x3 = x.astype(jnp.float32).reshape(n_shards, bpc * T, Cin)

        inputs = [x3]
        in_specs = [pl.BlockSpec((1, bpc * T, Cin), lambda i: (i, 0, 0))]
        layer_meta = []
        flops = 0
        transcendentals = 0
        L = T
        for li in range(n_layers):
            K, Coutp, Cout_real, has_gn, G, cpg, aux_off = self._layer_static[li]
            s = self.upsample_size[li]
            L_in, L_out = L, L * s

            ckey = (K, s, L_in)
            if ckey not in self._dcat_cache:
                self._dcat_cache[ckey] = jnp.asarray(_make_scatter(K, s, L_in))
            dcat = self._dcat_cache[ckey]
            wbig = self._wbig[li]

            inputs += [wbig, dcat]
            in_specs += [pl.BlockSpec(wbig.shape, lambda i: (0, 0)),
                         pl.BlockSpec(dcat.shape, lambda i: (0, 0))]
            layer_meta.append((K, Coutp, Cout_real, G, cpg, L_in, L_out, has_gn, aux_off))

            Cin_cols = wbig.shape[1]
            flops += B * (2 * (K * Coutp) * Cin_cols * L_in
                          + 2 * Coutp * (K * L_in) * L_out)
            if has_gn:
                flops += B * 10 * Coutp * L_out
                transcendentals += B * (Coutp * L_out + Coutp)
            L = L_out

        inputs.append(self._aux_all)
        in_specs.append(pl.BlockSpec(self._aux_all.shape, lambda i: (0, 0)))

        Cf = self.output_channel
        bytes_accessed = 4 * (sum(int(np.prod(a.shape)) for a in inputs) + B * Cf * L)

        kernel = functools.partial(_fused_decoder_kernel,
                                   layer_meta=tuple(layer_meta), bpc=bpc, eps=1e-5)
        out3 = pl.pallas_call(
            kernel,
            out_shape=jax.ShapeDtypeStruct((n_shards, bpc, Cf * L), jnp.float32),
            grid=(n_shards,),
            in_specs=in_specs,
            out_specs=pl.BlockSpec((1, bpc, Cf * L), lambda i: (i, 0, 0)),
            compiler_params=pltpu.CompilerParams(
                dimension_semantics=("parallel",)),
            cost_estimate=pl.CostEstimate(flops=int(flops),
                                          transcendentals=int(transcendentals),
                                          bytes_accessed=int(bytes_accessed)),
        )(*inputs)
        # free row-major reinterpretation of the lane-dense kernel output
        return out3.reshape(B, Cf, L)

    # pure-JAX reference (no Pallas) for correctness checking
    def reference(self, x):
        out = jnp.transpose(x, (0, 2, 1)).astype(jnp.float32)
        n = len(self.kernel_size)
        for i, (k, s) in enumerate(zip(self.kernel_size, self.upsample_size)):
            w, b, gnw, gnb = self.params[i]
            Cin, Cout, K = w.shape
            p = K // 2
            left = K - 1 - p
            right = K - 1 - p + (s - 1)
            wf = jnp.flip(jnp.transpose(w, (1, 0, 2)), axis=-1)   # (Cout, Cin, K)
            out = lax.conv_general_dilated(out, wf, window_strides=(1,),
                                           padding=[(left, right)],
                                           lhs_dilation=(s,),
                                           dimension_numbers=("NCH", "OIH", "NCH"))
            out = out + b[None, :, None]
            if i != n - 1:
                B, C, L = out.shape
                G = self.num_groups
                xg = out.reshape(B, G, (C // G) * L)
                mean = xg.mean(axis=-1, keepdims=True)
                var = ((xg - mean) ** 2).mean(axis=-1, keepdims=True)
                xn = ((xg - mean) / jnp.sqrt(var + 1e-5)).reshape(B, C, L)
                out = xn * gnw[None, :, None] + gnb[None, :, None]
                out = 0.5 * out * (1.0 + lax.erf(out * (1.0 / math.sqrt(2.0))))
        return out


if __name__ == "__main__":
    key = jax.random.PRNGKey(0)
    k_model, k_x = jax.random.split(key)

    B, T = 2, 8
    input_channel, output_channel = 16, 4
    # kernel_size [4, 3] -> oddified [5, 3] -> reversed [3, 5]; upsample reversed [2, 2]
    model = MAEEGConvDecoderPallas(input_channel, output_channel,
                                   kernel_size=[4, 3], upsample_size=[2, 2],
                                   dropout=0.1, key=k_model)

    x = jax.random.normal(k_x, (B, T, input_channel), jnp.float32)

    y = jax.block_until_ready(model(x))
    y_ref = model.reference(x)

    assert y.shape == (B, output_channel, T * 2 * 2), y.shape
    assert jnp.allclose(y, y_ref, atol=1e-4, rtol=1e-4), \
        float(jnp.max(jnp.abs(y - y_ref)))

    print("KERNEL_OK")
</pallas_src>

<mosaic_0001>
module attributes {stable_mosaic.version = 11 : i64} {
  func.func @_fused_decoder_kernel(%arg0: i32, %arg1: memref<1x16x16xf32, #tpu.memory_space<vmem>>, %arg2: memref<48x16xf32, #tpu.memory_space<vmem>>, %arg3: memref<24x16xf32, #tpu.memory_space<vmem>>, %arg4: memref<40x16xf32, #tpu.memory_space<vmem>>, %arg5: memref<80x32xf32, #tpu.memory_space<vmem>>, %arg6: memref<24x4xf32, #tpu.memory_space<vmem>>, %arg7: memref<1x2x128xf32, #tpu.memory_space<vmem>>) attributes {dimension_semantics = [#tpu.dimension_semantics<parallel>], iteration_bounds = array<i64: 1>, scalar_prefetch = 0 : i64, scratch_operands = 0 : i64, tpu.core_type = #tpu.core_type<tc>, window_params = [{transform_indices = @transform_0, window_bounds = array<i64: 1, 16, 16>}, {pipeline_mode = #tpu.pipeline_mode<synchronous>, transform_indices = @transform_1, window_bounds = array<i64: 48, 16>}, {pipeline_mode = #tpu.pipeline_mode<synchronous>, transform_indices = @transform_2, window_bounds = array<i64: 24, 16>}, {pipeline_mode = #tpu.pipeline_mode<synchronous>, transform_indices = @transform_3, window_bounds = array<i64: 40, 16>}, {pipeline_mode = #tpu.pipeline_mode<synchronous>, transform_indices = @transform_4, window_bounds = array<i64: 80, 32>}, {pipeline_mode = #tpu.pipeline_mode<synchronous>, transform_indices = @transform_5, window_bounds = array<i64: 24, 4>}, {transform_indices = @transform_6, window_bounds = array<i64: 1, 2, 128>}]} {
    %c0 = arith.constant 0 : index
    %c0_0 = arith.constant 0 : index
    %c0_1 = arith.constant 0 : index
    %0 = vector.load %arg1[%c0, %c0_0, %c0_1] : memref<1x16x16xf32, #tpu.memory_space<vmem>>, vector<1x16x16xf32>
    %1 = vector.shape_cast %0 : vector<1x16x16xf32> to vector<16x16xf32>
    %c0_2 = arith.constant 0 : index
    %c0_3 = arith.constant 0 : index
    %2 = vector.load %arg2[%c0_2, %c0_3] : memref<48x16xf32, #tpu.memory_space<vmem>>, vector<48x16xf32>
    %c0_4 = arith.constant 0 : index
    %c0_5 = arith.constant 0 : index
    %3 = vector.load %arg3[%c0_4, %c0_5] : memref<24x16xf32, #tpu.memory_space<vmem>>, vector<24x16xf32>
    %c0_6 = arith.constant 0 : index
    %c0_7 = arith.constant 0 : index
    %4 = vector.load %arg6[%c0_6, %c0_7] : memref<24x4xf32, #tpu.memory_space<vmem>>, vector<16x4xf32>
    %5 = tpu.concatenate %4, %4 in 0 : vector<16x4xf32>, vector<16x4xf32> -> vector<32x4xf32>
    %cst = arith.constant dense<0.000000e+00> : vector<48x16xf32>
    %6 = tpu.matmul %2, %1, %cst {dimension_numbers = #tpu.dot_dimension_numbers<[1], [1], [0], [0], [0, 0, 1, 0], [], []>} : vector<48x16xf32>, vector<16x16xf32>, vector<48x16xf32> -> vector<48x16xf32>
    %7 = vector.extract_strided_slice %6 {offsets = [0, 0], sizes = [16, 8], strides = [1, 1]} : vector<48x16xf32> to vector<16x8xf32>
    %8 = vector.extract_strided_slice %6 {offsets = [16, 0], sizes = [16, 8], strides = [1, 1]} : vector<48x16xf32> to vector<16x8xf32>
    %9 = vector.extract_strided_slice %6 {offsets = [32, 0], sizes = [16, 8], strides = [1, 1]} : vector<48x16xf32> to vector<16x8xf32>
    %10 = tpu.concatenate %7, %8, %9 in 1 : vector<16x8xf32>, vector<16x8xf32>, vector<16x8xf32> -> vector<16x24xf32>
    %11 = vector.extract_strided_slice %6 {offsets = [0, 8], sizes = [16, 8], strides = [1, 1]} : vector<48x16xf32> to vector<16x8xf32>
    %12 = vector.extract_strided_slice %6 {offsets = [16, 8], sizes = [16, 8], strides = [1, 1]} : vector<48x16xf32> to vector<16x8xf32>
    %13 = vector.extract_strided_slice %6 {offsets = [32, 8], sizes = [16, 8], strides = [1, 1]} : vector<48x16xf32> to vector<16x8xf32>
    %14 = tpu.concatenate %11, %12, %13 in 1 : vector<16x8xf32>, vector<16x8xf32>, vector<16x8xf32> -> vector<16x24xf32>
    %15 = tpu.concatenate %10, %14 in 0 : vector<16x24xf32>, vector<16x24xf32> -> vector<32x24xf32>
    %cst_8 = arith.constant dense<0.000000e+00> : vector<32x16xf32>
    %16 = tpu.matmul %15, %3, %cst_8 {dimension_numbers = #tpu.dot_dimension_numbers<[1], [0], [0], [1], [0, 0, 1, 1], [], []>} : vector<32x24xf32>, vector<24x16xf32>, vector<32x16xf32> -> vector<32x16xf32>
    %17 = vector.extract_strided_slice %5 {offsets = [0, 0], sizes = [32, 1], strides = [1, 1]} : vector<32x4xf32> to vector<32x1xf32>
    %18 = vector.broadcast %17 : vector<32x1xf32> to vector<32x16xf32>
    %19 = arith.addf %16, %18 : vector<32x16xf32>
    %cst_9 = arith.constant dense<0.000000e+00> : vector<32xf32>
    %20 = vector.multi_reduction <add>, %19, %cst_9 [1] : vector<32x16xf32> to vector<32xf32>
    %21 = vector.shape_cast %20 : vector<32xf32> to vector<32x1xf32>
    %22 = arith.mulf %19, %19 : vector<32x16xf32>
    %cst_10 = arith.constant dense<0.000000e+00> : vector<32xf32>
    %23 = vector.multi_reduction <add>, %22, %cst_10 [1] : vector<32x16xf32> to vector<32xf32>
    %24 = vector.shape_cast %23 : vector<32xf32> to vector<32x1xf32>
    %25 = tpu.concatenate %21, %24 in 1 : vector<32x1xf32>, vector<32x1xf32> -> vector<32x2xf32>
    %26 = vector.extract_strided_slice %25 {offsets = [0, 0], sizes = [16, 2], strides = [1, 1]} : vector<32x2xf32> to vector<16x2xf32>
    %27 = vector.extract_strided_slice %26 {offsets = [0, 0], sizes = [8, 2], strides = [1, 1]} : vector<16x2xf32> to vector<8x2xf32>
    %28 = vector.extract_strided_slice %26 {offsets = [8, 0], sizes = [8, 2], strides = [1, 1]} : vector<16x2xf32> to vector<8x2xf32>
    %29 = arith.addf %27, %28 : vector<8x2xf32>
    %30 = tpu.concatenate %29, %29 in 0 : vector<8x2xf32>, vector<8x2xf32> -> vector<16x2xf32>
    %31 = vector.extract_strided_slice %25 {offsets = [16, 0], sizes = [16, 2], strides = [1, 1]} : vector<32x2xf32> to vector<16x2xf32>
    %32 = vector.extract_strided_slice %31 {offsets = [0, 0], sizes = [8, 2], strides = [1, 1]} : vector<16x2xf32> to vector<8x2xf32>
    %33 = vector.extract_strided_slice %31 {offsets = [8, 0], sizes = [8, 2], strides = [1, 1]} : vector<16x2xf32> to vector<8x2xf32>
    %34 = arith.addf %32, %33 : vector<8x2xf32>
    %35 = tpu.concatenate %34, %34 in 0 : vector<8x2xf32>, vector<8x2xf32> -> vector<16x2xf32>
    %36 = tpu.concatenate %30, %35 in 0 : vector<16x2xf32>, vector<16x2xf32> -> vector<32x2xf32>
    %37 = vector.extract_strided_slice %36 {offsets = [0, 0], sizes = [32, 1], strides = [1, 1]} : vector<32x2xf32> to vector<32x1xf32>
    %cst_11 = arith.constant 3.200000e+01 : f32
    %38 = vector.broadcast %cst_11 : f32 to vector<32x1xf32>
    %39 = arith.divf %37, %38 : vector<32x1xf32>
    %40 = vector.extract_strided_slice %36 {offsets = [0, 1], sizes = [32, 1], strides = [1, 1]} : vector<32x2xf32> to vector<32x1xf32>
    %cst_12 = arith.constant 3.200000e+01 : f32
    %41 = vector.broadcast %cst_12 : f32 to vector<32x1xf32>
    %42 = arith.divf %40, %41 : vector<32x1xf32>
    %43 = arith.mulf %39, %39 : vector<32x1xf32>
    %44 = arith.subf %42, %43 : vector<32x1xf32>
    %cst_13 = arith.constant 0.000000e+00 : f32
    %45 = vector.broadcast %cst_13 : f32 to vector<32x1xf32>
    %46 = arith.maximumf %44, %45 : vector<32x1xf32>
    %47 = vector.broadcast %39 : vector<32x1xf32> to vector<32x16xf32>
    %48 = arith.subf %19, %47 : vector<32x16xf32>
    %cst_14 = arith.constant 9.99999974E-6 : f32
    %49 = vector.broadcast %cst_14 : f32 to vector<32x1xf32>
    %50 = arith.addf %46, %49 : vector<32x1xf32>
    %51 = math.rsqrt %50 : vector<32x1xf32>
    %52 = vector.broadcast %51 : vector<32x1xf32> to vector<32x16xf32>
    %53 = arith.mulf %48, %52 : vector<32x16xf32>
    %54 = vector.extract_strided_slice %5 {offsets = [0, 1], sizes = [32, 1], strides = [1, 1]} : vector<32x4xf32> to vector<32x1xf32>
    %55 = vector.broadcast %54 : vector<32x1xf32> to vector<32x16xf32>
    %56 = arith.mulf %53, %55 : vector<32x16xf32>
    %57 = vector.extract_strided_slice %5 {offsets = [0, 2], sizes = [32, 1], strides = [1, 1]} : vector<32x4xf32> to vector<32x1xf32>
    %58 = vector.broadcast %57 : vector<32x1xf32> to vector<32x16xf32>
    %59 = arith.addf %56, %58 : vector<32x16xf32>
    %cst_15 = arith.constant 5.000000e-01 : f32
    %60 = vector.broadcast %cst_15 : f32 to vector<32x16xf32>
    %61 = arith.mulf %60, %59 : vector<32x16xf32>
    %cst_16 = arith.constant 0.707106769 : f32
    %62 = vector.broadcast %cst_16 : f32 to vector<32x16xf32>
    %63 = arith.mulf %59, %62 : vector<32x16xf32>
    %64 = math.erf %63 : vector<32x16xf32>
    %cst_17 = arith.constant 1.000000e+00 : f32
    %65 = vector.broadcast %cst_17 : f32 to vector<32x16xf32>
    %66 = arith.addf %65, %64 : vector<32x16xf32>
    %67 = arith.mulf %61, %66 : vector<32x16xf32>
    %68 = vector.extract_strided_slice %67 {offsets = [0, 0], sizes = [16, 16], strides = [1, 1]} : vector<32x16xf32> to vector<16x16xf32>
    %69 = vector.extract_strided_slice %67 {offsets = [16, 0], sizes = [16, 16], strides = [1, 1]} : vector<32x16xf32> to vector<16x16xf32>
    %70 = tpu.concatenate %68, %69 in 1 : vector<16x16xf32>, vector<16x16xf32> -> vector<16x32xf32>
    %c0_18 = arith.constant 0 : index
    %c0_19 = arith.constant 0 : index
    %71 = vector.load %arg4[%c0_18, %c0_19] : memref<40x16xf32, #tpu.memory_space<vmem>>, vector<40x16xf32>
    %c0_20 = arith.constant 0 : index
    %c0_21 = arith.constant 0 : index
    %72 = vector.load %arg5[%c0_20, %c0_21] : memref<80x32xf32, #tpu.memory_space<vmem>>, vector<80x32xf32>
    %c16 = arith.constant 16 : index
    %c0_22 = arith.constant 0 : index
    %73 = vector.load %arg6[%c16, %c0_22] : memref<24x4xf32, #tpu.memory_space<vmem>>, vector<8x4xf32>
    %74 = tpu.concatenate %73, %73 in 0 : vector<8x4xf32>, vector<8x4xf32> -> vector<16x4xf32>
    %cst_23 = arith.constant dense<0.000000e+00> : vector<40x32xf32>
    %75 = tpu.matmul %71, %70, %cst_23 {dimension_numbers = #tpu.dot_dimension_numbers<[1], [0], [0], [1], [0, 0, 1, 1], [], []>} : vector<40x16xf32>, vector<16x32xf32>, vector<40x32xf32> -> vector<40x32xf32>
    %76 = vector.extract_strided_slice %75 {offsets = [0, 0], sizes = [8, 16], strides = [1, 1]} : vector<40x32xf32> to vector<8x16xf32>
    %77 = vector.extract_strided_slice %75 {offsets = [8, 0], sizes = [8, 16], strides = [1, 1]} : vector<40x32xf32> to vector<8x16xf32>
    %78 = vector.extract_strided_slice %75 {offsets = [16, 0], sizes = [8, 16], strides = [1, 1]} : vector<40x32xf32> to vector<8x16xf32>
    %79 = vector.extract_strided_slice %75 {offsets = [24, 0], sizes = [8, 16], strides = [1, 1]} : vector<40x32xf32> to vector<8x16xf32>
    %80 = vector.extract_strided_slice %75 {offsets = [32, 0], sizes = [8, 16], strides = [1, 1]} : vector<40x32xf32> to vector<8x16xf32>
    %81 = tpu.concatenate %76, %77, %78, %79, %80 in 1 : vector<8x16xf32>, vector<8x16xf32>, vector<8x16xf32>, vector<8x16xf32>, vector<8x16xf32> -> vector<8x80xf32>
    %82 = vector.extract_strided_slice %75 {offsets = [0, 16], sizes = [8, 16], strides = [1, 1]} : vector<40x32xf32> to vector<8x16xf32>
    %83 = vector.extract_strided_slice %75 {offsets = [8, 16], sizes = [8, 16], strides = [1, 1]} : vector<40x32xf32> to vector<8x16xf32>
    %84 = vector.extract_strided_slice %75 {offsets = [16, 16], sizes = [8, 16], strides = [1, 1]} : vector<40x32xf32> to vector<8x16xf32>
    %85 = vector.extract_strided_slice %75 {offsets = [24, 16], sizes = [8, 16], strides = [1, 1]} : vector<40x32xf32> to vector<8x16xf32>
    %86 = vector.extract_strided_slice %75 {offsets = [32, 16], sizes = [8, 16], strides = [1, 1]} : vector<40x32xf32> to vector<8x16xf32>
    %87 = tpu.concatenate %82, %83, %84, %85, %86 in 1 : vector<8x16xf32>, vector<8x16xf32>, vector<8x16xf32>, vector<8x16xf32>, vector<8x16xf32> -> vector<8x80xf32>
    %88 = tpu.concatenate %81, %87 in 0 : vector<8x80xf32>, vector<8x80xf32> -> vector<16x80xf32>
    %cst_24 = arith.constant dense<0.000000e+00> : vector<16x32xf32>
    %89 = tpu.matmul %88, %72, %cst_24 {dimension_numbers = #tpu.dot_dimension_numbers<[1], [0], [0], [1], [0, 0, 1, 1], [], []>} : vector<16x80xf32>, vector<80x32xf32>, vector<16x32xf32> -> vector<16x32xf32>
    %90 = vector.extract_strided_slice %74 {offsets = [0, 0], sizes = [16, 1], strides = [1, 1]} : vector<16x4xf32> to vector<16x1xf32>
    %91 = vector.broadcast %90 : vector<16x1xf32> to vector<16x32xf32>
    %92 = arith.addf %89, %91 : vector<16x32xf32>
    %93 = vector.extract_strided_slice %92 {offsets = [0, 0], sizes = [1, 32], strides = [1, 1]} : vector<16x32xf32> to vector<1x32xf32>
    %94 = vector.extract_strided_slice %92 {offsets = [1, 0], sizes = [1, 32], strides = [1, 1]} : vector<16x32xf32> to vector<1x32xf32>
    %95 = vector.extract_strided_slice %92 {offsets = [2, 0], sizes = [1, 32], strides = [1, 1]} : vector<16x32xf32> to vector<1x32xf32>
    %96 = vector.extract_strided_slice %92 {offsets = [3, 0], sizes = [1, 32], strides = [1, 1]} : vector<16x32xf32> to vector<1x32xf32>
    %97 = tpu.concatenate %93, %94, %95, %96 in 1 : vector<1x32xf32>, vector<1x32xf32>, vector<1x32xf32>, vector<1x32xf32> -> vector<1x128xf32>
    %98 = vector.extract_strided_slice %92 {offsets = [8, 0], sizes = [1, 32], strides = [1, 1]} : vector<16x32xf32> to vector<1x32xf32>
    %99 = vector.extract_strided_slice %92 {offsets = [9, 0], sizes = [1, 32], strides = [1, 1]} : vector<16x32xf32> to vector<1x32xf32>
    %100 = vector.extract_strided_slice %92 {offsets = [10, 0], sizes = [1, 32], strides = [1, 1]} : vector<16x32xf32> to vector<1x32xf32>
    %101 = vector.extract_strided_slice %92 {offsets = [11, 0], sizes = [1, 32], strides = [1, 1]} : vector<16x32xf32> to vector<1x32xf32>
    %102 = tpu.concatenate %98, %99, %100, %101 in 1 : vector<1x32xf32>, vector<1x32xf32>, vector<1x32xf32>, vector<1x32xf32> -> vector<1x128xf32>
    %103 = tpu.concatenate %97, %102 in 0 : vector<1x128xf32>, vector<1x128xf32> -> vector<2x128xf32>
    %c0_25 = arith.constant 0 : index
    %c0_26 = arith.constant 0 : index
    %c0_27 = arith.constant 0 : index
    %104 = vector.load %arg7[%c0_25, %c0_26, %c0_27] : memref<1x2x128xf32, #tpu.memory_space<vmem>>, vector<1x2x128xf32>
    %105 = vector.shape_cast %104 : vector<1x2x128xf32> to vector<2x128xf32>
    %106 = vector.shape_cast %103 : vector<2x128xf32> to vector<1x2x128xf32>
    tpu.vector_store %arg7[%c0_25, %c0_26, %c0_27], %106 {strides = array<i32>} : memref<1x2x128xf32, #tpu.memory_space<vmem>>, vector<1x2x128xf32>,
    return
  }
  func.func @transform_0(%arg0: i32) -> (i32, i32, i32) {
    %c0_i32 = arith.constant 0 : i32
    %c0_i32_0 = arith.constant 0 : i32
    %c0_i32_1 = arith.constant 0 : i32
    return %arg0, %c0_i32, %c0_i32_0 : i32, i32, i32
  }
  func.func @transform_1(%arg0: i32) -> (i32, i32) {
    %c0_i32 = arith.constant 0 : i32
    %c0_i32_0 = arith.constant 0 : i32
    %c0_i32_1 = arith.constant 0 : i32
    return %c0_i32, %c0_i32_0 : i32, i32
  }
  func.func @transform_2(%arg0: i32) -> (i32, i32) {
    %c0_i32 = arith.constant 0 : i32
    %c0_i32_0 = arith.constant 0 : i32
    %c0_i32_1 = arith.constant 0 : i32
    return %c0_i32, %c0_i32_0 : i32, i32
  }
  func.func @transform_3(%arg0: i32) -> (i32, i32) {
    %c0_i32 = arith.constant 0 : i32
    %c0_i32_0 = arith.constant 0 : i32
    %c0_i32_1 = arith.constant 0 : i32
    return %c0_i32, %c0_i32_0 : i32, i32
  }
  func.func @transform_4(%arg0: i32) -> (i32, i32) {
    %c0_i32 = arith.constant 0 : i32
    %c0_i32_0 = arith.constant 0 : i32
    %c0_i32_1 = arith.constant 0 : i32
    return %c0_i32, %c0_i32_0 : i32, i32
  }
  func.func @transform_5(%arg0: i32) -> (i32, i32) {
    %c0_i32 = arith.constant 0 : i32
    %c0_i32_0 = arith.constant 0 : i32
    %c0_i32_1 = arith.constant 0 : i32
    return %c0_i32, %c0_i32_0 : i32, i32
  }
  func.func @transform_6(%arg0: i32) -> (i32, i32, i32) {
    %c0_i32 = arith.constant 0 : i32
    %c0_i32_0 = arith.constant 0 : i32
    %c0_i32_1 = arith.constant 0 : i32
    return %arg0, %c0_i32, %c0_i32_0 : i32, i32, i32
  }
}

</mosaic_0001>

<llo_original>
// kernel: tpu_custom_call.1
$region0: #{tpu_custom_call.1}
  #allocation0 [shape = 'u32[]', space=smem, size = 0x4, offset = 0x4, fixed_abs, tag = 'smem constant byte address 0x4 - core index']
  #allocation1 [shape = 'u32[144,128]{1,0:T(1,128)}', space=vmem, size = 0x12000, scoped, tag = 'internal scratch']
  %s0 = inlined_call_operand.vmem [shape: f32[1,16,16], index: 0, kind: input, shape index: {}]
  %s1 = inlined_call_operand.vmem [shape: f32[48,16], index: 1, kind: input, shape index: {}]
  %s2 = inlined_call_operand.vmem [shape: f32[24,16], index: 2, kind: input, shape index: {}]
  %s3 = inlined_call_operand.vmem [shape: f32[40,16], index: 3, kind: input, shape index: {}]
  %s4 = inlined_call_operand.vmem [shape: f32[80,32], index: 4, kind: input, shape index: {}]
  %s5 = inlined_call_operand.vmem [shape: f32[24,4], index: 5, kind: input, shape index: {}]
  %s6 = inlined_call_operand.hbm [shape: f32[1,2,128], index: 6, kind: output, shape index: {}]
  %s7 = sld [smem:[#allocation0]]
  $region34: #{tpu_custom_call.1} parent=0
    _
  %s9 = ssub.s32 1, %s7
  %s10 = scalar_select 0, %s9, %s7
  $region1: #{tpu_custom_call.1} parent=0
    #allocation2 [shape = 'u8[1024]{0}', space=vmem, size = 0x400, scoped, tag = 'output window, operand 0, single buffered']
    #allocation3 [shape = 's32[1]{0}', space=sflag, size = 0x4, scoped, tag = 'scoped memory for tpu_custom_call.1']
    %11 = vsyncpa [#allocation3], 0
    // Predicated region
    $region2: #{tpu_custom_call.1} parent=1 // pred_check
      _
    $region3: #{tpu_custom_call.1} parent=1 // pred_check_branch
      %13 = sbr.rel (0) target = $region5
    $region4: #{tpu_custom_call.1} parent=1 // pred_region
      _
    $region5: #{tpu_custom_call.1} parent=1 // pred_fallthru
      _
    // Predicated region
    $region6: #{tpu_custom_call.1} parent=1 // pred_check
      _
    $region7: #{tpu_custom_call.1} parent=1 // pred_check_branch
      %15 = sbr.rel (0) target = $region9
    $region8: #{tpu_custom_call.1} parent=1 // pred_region
      _
    $region9: #{tpu_custom_call.1} parent=1 // pred_fallthru
      _
    // Predicated region
    $region10: #{tpu_custom_call.1} parent=1 // pred_check
      _
    $region11: #{tpu_custom_call.1} parent=1 // pred_check_branch
      %17 = sbr.rel (0) target = $region13
    $region12: #{tpu_custom_call.1} parent=1 // pred_region
      _
    $region13: #{tpu_custom_call.1} parent=1 // pred_fallthru
      _
    // Predicated region
    $region14: #{tpu_custom_call.1} parent=1 // pred_check
      _
    $region15: #{tpu_custom_call.1} parent=1 // pred_check_branch
      %19 = sbr.rel (0) target = $region17
    $region16: #{tpu_custom_call.1} parent=1 // pred_region
      _
    $region17: #{tpu_custom_call.1} parent=1 // pred_fallthru
      _
    // Predicated region
    $region18: #{tpu_custom_call.1} parent=1 // pred_check
      _
    $region19: #{tpu_custom_call.1} parent=1 // pred_check_branch
      %21 = sbr.rel (0) target = $region21
    $region20: #{tpu_custom_call.1} parent=1 // pred_region
      _
    $region21: #{tpu_custom_call.1} parent=1 // pred_fallthru
      _
    // Predicated region
    $region22: #{tpu_custom_call.1} parent=1 // pred_check
      _
    $region23: #{tpu_custom_call.1} parent=1 // pred_check_branch
      %23 = sbr.rel (0) target = $region25
    $region24: #{tpu_custom_call.1} parent=1 // pred_region
      _
    $region25: #{tpu_custom_call.1} parent=1 // pred_fallthru
      _
    %v24 = vld [vmem:[%s0] sm:$0xff]
    %v25 = vld [vmem:[%s0 + $0x8] sm:$0xff]
    %v26 = vld [vmem:[%s1] sm:$0xff]
    %v27 = vld [vmem:[%s1 + $0x8] sm:$0xff]
    %v28 = vld [vmem:[%s1 + $0x10] sm:$0xff]
    %v29 = vld [vmem:[%s1 + $0x18] sm:$0xff]
    %v30 = vld [vmem:[%s1 + $0x20] sm:$0xff]
    %v31 = vld [vmem:[%s1 + $0x28] sm:$0xff]
    %v32 = vld [vmem:[%s2] sm:$0xff]
    %v33 = vld [vmem:[%s2 + $0x8] sm:$0xff]
    %v34 = vld [vmem:[%s2 + $0x10] sm:$0xff]
    %v35 = vld [vmem:[%s5] sm:$0xff]
    %v36 = vld [vmem:[%s5 + $0x8] sm:$0xff]
    %vm37 = vcmask 130048
    %v39 = vsel %vm37, %v26, 0
    %v42 = vsel %vm37, %v27, 0
    %v45 = vsel %vm37, %v28, 0
    %v48 = vsel %vm37, %v29, 0
    %v51 = vsel %vm37, %v30, 0
    %v54 = vsel %vm37, %v31, 0
    %v57 = vsel %vm37, %v24, 0
    %v60 = vsel %vm37, %v25, 0
    %62 = vmatprep.subr.mxu0 0.0
    %63 = vmatpush1.xpose.msra.mxu0 0.0
    %64 = vmatprep.subr.mxu0 0.0
    %65 = vmatpush1.xpose.msra.mxu0 0.0
    %66 = vmatprep.subr.mxu0 0.0
    %67 = vmatpush1.xpose.msra.mxu0 0.0
    %68 = vmatprep.subr.mxu0 0.0
    %69 = vmatpush1.xpose.msra.mxu0 0.0
    %70 = vmatprep.subr.mxu0 0.0
    %71 = vmatpush1.xpose.msra.mxu0 0.0
    %72 = vmatprep.subr.mxu0 0.0
    %73 = vmatpush1.xpose.msra.mxu0 0.0
    %74 = vmatprep.subr.mxu0 0.0
    %75 = vmatpush1.xpose.msra.mxu0 0.0
    %76 = vmatprep.subr.mxu0 0.0
    %77 = vmatpush1.xpose.msra.mxu0 0.0
    %78 = vmatprep.subr.mxu0 0.0
    %79 = vmatpush1.xpose.msra.mxu0 0.0
    %80 = vmatprep.subr.mxu0 0.0
    %81 = vmatpush1.xpose.msra.mxu0 0.0
    %82 = vmatprep.subr.mxu0 0.0
    %83 = vmatpush1.xpose.msra.mxu0 0.0
    %84 = vmatprep.subr.mxu0 0.0
    %85 = vmatpush1.xpose.msra.mxu0 0.0
    %86 = vmatprep.subr.mxu0 0.0
    %87 = vmatpush1.xpose.msra.mxu0 0.0
    %88 = vmatprep.subr.mxu0 0.0
    %89 = vmatpush1.xpose.msra.mxu0 0.0
    %90 = vmatprep.subr.mxu0 0.0
    %91 = vmatpush1.xpose.msra.mxu0 %v60
    %92 = vmatprep.subr.mxu0 0.0
    %93 = vmatpush1.xpose.msra.mxu0 %v57
    %94 = vmatprep.subr.mxu0 0.0
    %95 = vmatpush2.xpose.msra.mxu0 0.0
    %96 = vmatprep.subr.mxu0 0.0
    %97 = vmatpush2.xpose.msra.mxu0 0.0
    %98 = vmatprep.subr.mxu0 0.0
    %99 = vmatpush2.xpose.msra.mxu0 0.0
    %100 = vmatprep.subr.mxu0 0.0
    %101 = vmatpush2.xpose.msra.mxu0 0.0
    %102 = vmatprep.subr.mxu0 0.0
    %103 = vmatpush2.xpose.msra.mxu0 0.0
    %104 = vmatprep.subr.mxu0 0.0
    %105 = vmatpush2.xpose.msra.mxu0 0.0
    %106 = vmatprep.subr.mxu0 0.0
    %107 = vmatpush2.xpose.msra.mxu0 0.0
    %108 = vmatprep.subr.mxu0 0.0
    %109 = vmatpush2.xpose.msra.mxu0 0.0
    %110 = vmatprep.subr.mxu0 0.0
    %111 = vmatpush2.xpose.msra.mxu0 0.0
    %112 = vmatprep.subr.mxu0 0.0
    %113 = vmatpush2.xpose.msra.mxu0 0.0
    %114 = vmatprep.subr.mxu0 0.0
    %115 = vmatpush2.xpose.msra.mxu0 0.0
    %116 = vmatprep.subr.mxu0 0.0
    %117 = vmatpush2.xpose.msra.mxu0 0.0
    %118 = vmatprep.subr.mxu0 0.0
    %119 = vmatpush2.xpose.msra.mxu0 0.0
    %120 = vmatprep.subr.mxu0 0.0
    %121 = vmatpush2.xpose.msra.mxu0 0.0
    %122 = vmatprep.subr.mxu0 0.0
    %123 = vmatpush2.xpose.msra.mxu0 0.0
    %124 = vmatprep.subr.mxu0 0.0
    %125 = vmatpush2.xpose.msra.mxu0 0.0
    %126 = vmatprep.mubr.f32.mxu0 0.0
    %127 = vmatmul.mubr.f32.gmra.mxu0 %v39
    %v128 = vpop.f32.mrf.mxu0
    %v129 = vadd.f32 0.0, %v128
    %v130 = vpop.f32.mrf.mxu0
    %131 = vmatprep.mubr.f32.mxu0 0.0
    %132 = vmatmul.mubr.f32.gmra.mxu0 %v42
    %v133 = vpop.f32.mrf.mxu0
    %v134 = vadd.f32 0.0, %v133
    %v135 = vpop.f32.mrf.mxu0
    %136 = vmatprep.mubr.f32.mxu0 0.0
    %137 = vmatmul.mubr.f32.gmra.mxu0 %v45
    %v138 = vpop.f32.mrf.mxu0
    %v139 = vadd.f32 0.0, %v138
    %v140 = vpop.f32.mrf.mxu0
    %141 = vmatprep.mubr.f32.mxu0 0.0
    %142 = vmatmul.mubr.f32.gmra.mxu0 %v48
    %v143 = vpop.f32.mrf.mxu0
    %v144 = vadd.f32 0.0, %v143
    %v145 = vpop.f32.mrf.mxu0
    %146 = vmatprep.mubr.f32.mxu0 0.0
    %147 = vmatmul.mubr.f32.gmra.mxu0 %v51
    %v148 = vpop.f32.mrf.mxu0
    %v149 = vadd.f32 0.0, %v148
    %v150 = vpop.f32.mrf.mxu0
    %151 = vmatprep.mubr.f32.mxu0 0.0
    %152 = vmatmul.mubr.f32.gmra.mxu0 %v54
    %v153 = vpop.f32.mrf.mxu0
    %v154 = vadd.f32 0.0, %v153
    %v155 = vpop.f32.mrf.mxu0
    %156 = vdwg.mxu0
    %159 = vrot.lane.b32.xlu0 %v139, 8
    %v160 = vpop.permute.xlu0 %159
    %161 = vrot.lane.b32.xlu0 %v144, 8
    %v162 = vpop.permute.xlu0 %161
    %167 = vrot.lane.b32.xlu0 %v149, 16
    %v168 = vpop.permute.xlu0 %167
    %169 = vrot.lane.b32.xlu0 %v154, 16
    %v170 = vpop.permute.xlu0 %169
    %vm173 = vcmask 64512
    %v174 = vsel %vm173, %v129, %v160
    %v175 = vsel %vm173, %v134, %v162
    %v176 = vsel %vm37, %v174, %v168
    %v177 = vsel %vm37, %v175, %v170
    %180 = vrot.lane.b32.xlu0 %v129, 120
    %v181 = vpop.permute.xlu0 %180
    %182 = vrot.lane.b32.xlu0 %v134, 120
    %v183 = vpop.permute.xlu0 %182
    %186 = vrot.lane.b32.xlu0 %v149, 8
    %v187 = vpop.permute.xlu0 %186
    %188 = vrot.lane.b32.xlu0 %v154, 8
    %v189 = vpop.permute.xlu0 %188
    %v192 = vsel %vm173, %v181, %v139
    %v193 = vsel %vm173, %v183, %v144
    %v194 = vsel %vm37, %v192, %v187
    %v195 = vsel %vm37, %v193, %v189
    %197 = vset.pattern.permute.xlu0 0
    %198 = vperm.xlu0 %197, %v35
    %v199 = vpop.permute.xlu0 %198
    %202 = vset.pattern.permute.xlu0 0
    %203 = vperm.xlu0 %202, %v36
    %v204 = vpop.permute.xlu0 %203
    %vm206 = vcmask 195584
    %v208 = vsel %vm206, %v176, 0
    %v211 = vsel %vm206, %v177, 0
    %v214 = vsel %vm206, %v194, 0
    %v217 = vsel %vm206, %v195, 0
    %219 = vmatprep.subr.mxu0 0.0
    %220 = vmatpush1.msra.mxu0 0.0
    %221 = vmatprep.subr.mxu0 0.0
    %222 = vmatpush1.msra.mxu0 0.0
    %223 = vmatprep.subr.mxu0 0.0
    %224 = vmatpush1.msra.mxu0 0.0
    %225 = vmatprep.subr.mxu0 0.0
    %226 = vmatpush1.msra.mxu0 0.0
    %227 = vmatprep.subr.mxu0 0.0
    %228 = vmatpush1.msra.mxu0 0.0
    %229 = vmatprep.subr.mxu0 0.0
    %230 = vmatpush1.msra.mxu0 0.0
    %231 = vmatprep.subr.mxu0 0.0
    %232 = vmatpush1.msra.mxu0 0.0
    %233 = vmatprep.subr.mxu0 0.0
    %234 = vmatpush1.msra.mxu0 0.0
    %235 = vmatprep.subr.mxu0 0.0
    %236 = vmatpush1.msra.mxu0 0.0
    %237 = vmatprep.subr.mxu0 0.0
    %238 = vmatpush1.msra.mxu0 0.0
    %239 = vmatprep.subr.mxu0 0.0
    %240 = vmatpush1.msra.mxu0 0.0
    %241 = vmatprep.subr.mxu0 0.0
    %242 = vmatpush1.msra.mxu0 0.0
    %243 = vmatprep.subr.mxu0 0.0
    %244 = vmatpush1.msra.mxu0 0.0
    %245 = vmatprep.subr.mxu0 0.0
    %246 = vmatpush1.msra.mxu0 %v34
    %247 = vmatprep.subr.mxu0 0.0
    %248 = vmatpush1.msra.mxu0 %v33
    %249 = vmatprep.subr.mxu0 0.0
    %250 = vmatpush1.msra.mxu0 %v32
    %251 = vmatprep.subr.mxu0 0.0
    %252 = vmatpush2.msra.mxu0 0.0
    %253 = vmatprep.subr.mxu0 0.0
    %254 = vmatpush2.msra.mxu0 0.0
    %255 = vmatprep.subr.mxu0 0.0
    %256 = vmatpush2.msra.mxu0 0.0
    %257 = vmatprep.subr.mxu0 0.0
    %258 = vmatpush2.msra.mxu0 0.0
    %259 = vmatprep.subr.mxu0 0.0
    %260 = vmatpush2.msra.mxu0 0.0
    %261 = vmatprep.subr.mxu0 0.0
    %262 = vmatpush2.msra.mxu0 0.0
    %263 = vmatprep.subr.mxu0 0.0
    %264 = vmatpush2.msra.mxu0 0.0
    %265 = vmatprep.subr.mxu0 0.0
    %266 = vmatpush2.msra.mxu0 0.0
    %267 = vmatprep.subr.mxu0 0.0
    %268 = vmatpush2.msra.mxu0 0.0
    %269 = vmatprep.subr.mxu0 0.0
    %270 = vmatpush2.msra.mxu0 0.0
    %271 = vmatprep.subr.mxu0 0.0
    %272 = vmatpush2.msra.mxu0 0.0
    %273 = vmatprep.subr.mxu0 0.0
    %274 = vmatpush2.msra.mxu0 0.0
    %275 = vmatprep.subr.mxu0 0.0
    %276 = vmatpush2.msra.mxu0 0.0
    %277 = vmatprep.subr.mxu0 0.0
    %278 = vmatpush2.msra.mxu0 0.0
    %279 = vmatprep.subr.mxu0 0.0
    %280 = vmatpush2.msra.mxu0 0.0
    %281 = vmatprep.subr.mxu0 0.0
    %282 = vmatpush2.msra.mxu0 0.0
    %283 = vmatprep.mubr.f32.mxu0 0.0
    %284 = vmatmul.mubr.f32.gmra.mxu0 %v208
    %v285 = vpop.f32.mrf.mxu0
    %v286 = vadd.f32 %v199, %v285
    %v287 = vpop.f32.mrf.mxu0
    %288 = vmatprep.mubr.f32.mxu0 0.0
    %289 = vmatmul.mubr.f32.gmra.mxu0 %v211
    %v290 = vpop.f32.mrf.mxu0
    %v291 = vadd.f32 %v204, %v290
    %v292 = vpop.f32.mrf.mxu0
    %293 = vmatprep.mubr.f32.mxu0 0.0
    %294 = vmatmul.mubr.f32.gmra.mxu0 %v214
    %v295 = vpop.f32.mrf.mxu0
    %v296 = vadd.f32 %v199, %v295
    %v297 = vpop.f32.mrf.mxu0
    %298 = vmatprep.mubr.f32.mxu0 0.0
    %299 = vmatmul.mubr.f32.gmra.mxu0 %v217
    %v300 = vpop.f32.mrf.mxu0
    %v301 = vadd.f32 %v204, %v300
    %v302 = vpop.f32.mrf.mxu0
    %303 = vdwg.mxu0
    %v304 = vsel %vm37, %v286, 0.0
    %305 = vadd.xlane.f32.xlu0 %v304
    %v306 = vpop.xlane.xlu0 %305
    %v307 = vsel %vm37, %v291, 0.0
    %308 = vadd.xlane.f32.xlu0 %v307
    %v309 = vpop.xlane.xlu0 %308
    %v310 = vsel %vm37, %v296, 0.0
    %311 = vadd.xlane.f32.xlu0 %v310
    %v312 = vpop.xlane.xlu0 %311
    %v313 = vsel %vm37, %v301, 0.0
    %314 = vadd.xlane.f32.xlu0 %v313
    %v315 = vpop.xlane.xlu0 %314
    %v316 = vmul.f32 %v286, %v286
    %v317 = vmul.f32 %v291, %v291
    %v318 = vmul.f32 %v296, %v296
    %v319 = vmul.f32 %v301, %v301
    %v320 = vsel %vm37, %v316, 0.0
    %321 = vadd.xlane.f32.xlu0 %v320
    %v322 = vpop.xlane.xlu0 %321
    %v323 = vsel %vm37, %v317, 0.0
    %324 = vadd.xlane.f32.xlu0 %v323
    %v325 = vpop.xlane.xlu0 %324
    %v326 = vsel %vm37, %v318, 0.0
    %327 = vadd.xlane.f32.xlu0 %v326
    %v328 = vpop.xlane.xlu0 %327
    %v329 = vsel %vm37, %v319, 0.0
    %330 = vadd.xlane.f32.xlu0 %v329
    %v331 = vpop.xlane.xlu0 %330
    %vm332 = vcmask 7168
    %v333 = vsel %vm332, %v306, %v322
    %v334 = vsel %vm332, %v309, %v325
    %v335 = vsel %vm332, %v312, %v328
    %v336 = vsel %vm332, %v315, %v331
    %v337 = vadd.f32 %v333, %v334
    %v338 = vadd.f32 %v335, %v336
    %v339 = vrcp.pop 32.0
    %v340 = vmul.f32 %v337, %v339
    %v341 = vmul.f32 %v338, %v339
    %v342 = vmul.f32 %v340, %v340
    %v343 = vmul.f32 %v341, %v341
    %346 = vrot.lane.b32.xlu0 %v342, 1
    %v347 = vpop.permute.xlu0 %346
    %348 = vrot.lane.b32.xlu0 %v343, 1
    %v349 = vpop.permute.xlu0 %348
    %v352 = vsub.f32 %v340, %v347
    %v353 = vsub.f32 %v341, %v349
    %v354 = vmax.f32 %v352, 0.0
    %v355 = vmax.f32 %v353, 0.0
    %357 = vset.pattern.permute.xlu0 0
    %358 = vperm.xlu0 %357, %v340
    %v359 = vpop.permute.xlu0 %358
    %362 = vset.pattern.permute.xlu0 0
    %363 = vperm.xlu0 %362, %v341
    %v364 = vpop.permute.xlu0 %363
    %v366 = vsub.f32 %v286, %v359
    %v367 = vsub.f32 %v291, %v359
    %v368 = vsub.f32 %v296, %v364
    %v369 = vsub.f32 %v301, %v364
    %v370 = vadd.f32 %v354, 1e-05
    %v371 = vadd.f32 %v355, 1e-05
    %v372 = vrsqrt.pop %v370
    %v373 = vrsqrt.pop %v371
    %375 = vset.pattern.permute.xlu0 1
    %376 = vperm.xlu0 %375, %v372
    %v377 = vpop.permute.xlu0 %376
    %380 = vset.pattern.permute.xlu0 1
    %381 = vperm.xlu0 %380, %v373
    %v382 = vpop.permute.xlu0 %381
    %v384 = vmul.f32 %v366, %v377
    %v385 = vmul.f32 %v367, %v377
    %v386 = vmul.f32 %v368, %v382
    %v387 = vmul.f32 %v369, %v382
    %388 = vset.pattern.permute.xlu0 1
    %389 = vperm.xlu0 %388, %v35
    %v390 = vpop.permute.xlu0 %389
    %392 = vset.pattern.permute.xlu0 1
    %393 = vperm.xlu0 %392, %v36
    %v394 = vpop.permute.xlu0 %393
    %v396 = vmul.f32 %v384, %v390
    %v397 = vmul.f32 %v385, %v394
    %v398 = vmul.f32 %v386, %v390
    %v399 = vmul.f32 %v387, %v394
    %400 = vset.pattern.permute.xlu0 2
    %401 = vperm.xlu0 %400, %v35
    %v402 = vpop.permute.xlu0 %401
    %404 = vset.pattern.permute.xlu0 2
    %405 = vperm.xlu0 %404, %v36
    %v406 = vpop.permute.xlu0 %405
    %v408 = vadd.f32 %v396, %v402
    %v409 = vadd.f32 %v397, %v406
    %v410 = vadd.f32 %v398, %v402
    %v411 = vadd.f32 %v399, %v406
    %v412 = vmul.f32 %v408, 0.5
    %v413 = vmul.f32 %v409, 0.5
    %v414 = vmul.f32 %v410, 0.5
    %v415 = vmul.f32 %v411, 0.5
    %v416 = vmul.f32 %v408, 0.70710677
    %v417 = vmul.f32 %v409, 0.70710677
    %v418 = vmul.f32 %v410, 0.70710677
    %v419 = vmul.f32 %v411, 0.70710677
    %v420 = verf.f32.pop %v416
    %v421 = verf.f32.pop %v417
    %v422 = verf.f32.pop %v418
    %v423 = verf.f32.pop %v419
    %v424 = vadd.f32 %v420, 1.0
    %v425 = vadd.f32 %v421, 1.0
    %v426 = vadd.f32 %v422, 1.0
    %v427 = vadd.f32 %v423, 1.0
    %v428 = vmul.f32 %v412, %v424
    %v429 = vmul.f32 %v413, %v425
    %v430 = vmul.f32 %v414, %v426
    %v431 = vmul.f32 %v415, %v427
    %434 = vrot.lane.b32.xlu0 %v430, 16
    %v435 = vpop.permute.xlu0 %434
    %436 = vrot.lane.b32.xlu0 %v431, 16
    %v437 = vpop.permute.xlu0 %436
    %v440 = vsel %vm37, %v428, %v435
    %v441 = vsel %vm37, %v429, %v437
    %v442 = vld [vmem:[%s3] sm:$0xff]
    %v443 = vld [vmem:[%s3 + $0x8] sm:$0xff]
    %v444 = vld [vmem:[%s3 + $0x10] sm:$0xff]
    %v445 = vld [vmem:[%s3 + $0x18] sm:$0xff]
    %v446 = vld [vmem:[%s3 + $0x20] sm:$0xff]
    %v447 = vld [vmem:[%s4] sm:$0xff]
    %v448 = vld [vmem:[%s4 + $0x8] sm:$0xff]
    %v449 = vld [vmem:[%s4 + $0x10] sm:$0xff]
    %v450 = vld [vmem:[%s4 + $0x18] sm:$0xff]
    %v451 = vld [vmem:[%s4 + $0x20] sm:$0xff]
    %v452 = vld [vmem:[%s4 + $0x28] sm:$0xff]
    %v453 = vld [vmem:[%s4 + $0x30] sm:$0xff]
    %v454 = vld [vmem:[%s4 + $0x38] sm:$0xff]
    %v455 = vld [vmem:[%s4 + $0x40] sm:$0xff]
    %v456 = vld [vmem:[%s4 + $0x48] sm:$0xff]
    %v457 = vld [vmem:[%s5 + $0x10] sm:$0xff]
    %v459 = vsel %vm37, %v442, 0
    %v462 = vsel %vm37, %v443, 0
    %v465 = vsel %vm37, %v444, 0
    %v468 = vsel %vm37, %v445, 0
    %v471 = vsel %vm37, %v446, 0
    %473 = vmatprep.subr.mxu0 0.0
    %474 = vmatpush1.msra.mxu0 0.0
    %475 = vmatprep.subr.mxu0 0.0
    %476 = vmatpush1.msra.mxu0 0.0
    %477 = vmatprep.subr.mxu0 0.0
    %478 = vmatpush1.msra.mxu0 0.0
    %479 = vmatprep.subr.mxu0 0.0
    %480 = vmatpush1.msra.mxu0 0.0
    %481 = vmatprep.subr.mxu0 0.0
    %482 = vmatpush1.msra.mxu0 0.0
    %483 = vmatprep.subr.mxu0 0.0
    %484 = vmatpush1.msra.mxu0 0.0
    %485 = vmatprep.subr.mxu0 0.0
    %486 = vmatpush1.msra.mxu0 0.0
    %487 = vmatprep.subr.mxu0 0.0
    %488 = vmatpush1.msra.mxu0 0.0
    %489 = vmatprep.subr.mxu0 0.0
    %490 = vmatpush1.msra.mxu0 0.0
    %491 = vmatprep.subr.mxu0 0.0
    %492 = vmatpush1.msra.mxu0 0.0
    %493 = vmatprep.subr.mxu0 0.0
    %494 = vmatpush1.msra.mxu0 0.0
    %495 = vmatprep.subr.mxu0 0.0
    %496 = vmatpush1.msra.mxu0 0.0
    %497 = vmatprep.subr.mxu0 0.0
    %498 = vmatpush1.msra.mxu0 0.0
    %499 = vmatprep.subr.mxu0 0.0
    %500 = vmatpush1.msra.mxu0 0.0
    %501 = vmatprep.subr.mxu0 0.0
    %502 = vmatpush1.msra.mxu0 %v441
    %503 = vmatprep.subr.mxu0 0.0
    %504 = vmatpush1.msra.mxu0 %v440
    %505 = vmatprep.subr.mxu0 0.0
    %506 = vmatpush2.msra.mxu0 0.0
    %507 = vmatprep.subr.mxu0 0.0
    %508 = vmatpush2.msra.mxu0 0.0
    %509 = vmatprep.subr.mxu0 0.0
    %510 = vmatpush2.msra.mxu0 0.0
    %511 = vmatprep.subr.mxu0 0.0
    %512 = vmatpush2.msra.mxu0 0.0
    %513 = vmatprep.subr.mxu0 0.0
    %514 = vmatpush2.msra.mxu0 0.0
    %515 = vmatprep.subr.mxu0 0.0
    %516 = vmatpush2.msra.mxu0 0.0
    %517 = vmatprep.subr.mxu0 0.0
    %518 = vmatpush2.msra.mxu0 0.0
    %519 = vmatprep.subr.mxu0 0.0
    %520 = vmatpush2.msra.mxu0 0.0
    %521 = vmatprep.subr.mxu0 0.0
    %522 = vmatpush2.msra.mxu0 0.0
    %523 = vmatprep.subr.mxu0 0.0
    %524 = vmatpush2.msra.mxu0 0.0
    %525 = vmatprep.subr.mxu0 0.0
    %526 = vmatpush2.msra.mxu0 0.0
    %527 = vmatprep.subr.mxu0 0.0
    %528 = vmatpush2.msra.mxu0 0.0
    %529 = vmatprep.subr.mxu0 0.0
    %530 = vmatpush2.msra.mxu0 0.0
    %531 = vmatprep.subr.mxu0 0.0
    %532 = vmatpush2.msra.mxu0 0.0
    %533 = vmatprep.subr.mxu0 0.0
    %534 = vmatpush2.msra.mxu0 0.0
    %535 = vmatprep.subr.mxu0 0.0
    %536 = vmatpush2.msra.mxu0 0.0
    %537 = vmatprep.mubr.f32.mxu0 0.0
    %538 = vmatmul.mubr.f32.gmra.mxu0 %v459
    %v539 = vpop.f32.mrf.mxu0
    %v540 = vadd.f32 0.0, %v539
    %v541 = vpop.f32.mrf.mxu0
    %542 = vmatprep.mubr.f32.mxu0 0.0
    %543 = vmatmul.mubr.f32.gmra.mxu0 %v462
    %v544 = vpop.f32.mrf.mxu0
    %v545 = vadd.f32 0.0, %v544
    %v546 = vpop.f32.mrf.mxu0
    %547 = vmatprep.mubr.f32.mxu0 0.0
    %548 = vmatmul.mubr.f32.gmra.mxu0 %v465
    %v549 = vpop.f32.mrf.mxu0
    %v550 = vadd.f32 0.0, %v549
    %v551 = vpop.f32.mrf.mxu0
    %552 = vmatprep.mubr.f32.mxu0 0.0
    %553 = vmatmul.mubr.f32.gmra.mxu0 %v468
    %v554 = vpop.f32.mrf.mxu0
    %v555 = vadd.f32 0.0, %v554
    %v556 = vpop.f32.mrf.mxu0
    %557 = vmatprep.mubr.f32.mxu0 0.0
    %558 = vmatmul.mubr.f32.gmra.mxu0 %v471
    %v559 = vpop.f32.mrf.mxu0
    %v560 = vadd.f32 0.0, %v559
    %v561 = vpop.f32.mrf.mxu0
    %562 = vdwg.mxu0
    %564 = vrot.lane.b32.xlu0 %v545, 16
    %v565 = vpop.permute.xlu0 %564
    %568 = vrot.lane.b32.xlu0 %v550, 32
    %v569 = vpop.permute.xlu0 %568
    %572 = vrot.lane.b32.xlu0 %v555, 48
    %v573 = vpop.permute.xlu0 %572
    %576 = vrot.lane.b32.xlu0 %v560, 64
    %v577 = vpop.permute.xlu0 %576
    %v579 = vsel %vm37, %v540, %v565
    %vm580 = vcmask 261120
    %v581 = vsel %vm580, %v579, %v569
    %vm582 = vcmask 392192
    %v583 = vsel %vm582, %v581, %v573
    %vm584 = vcmask 523264
    %v585 = vsel %vm584, %v583, %v577
    %587 = vrot.lane.b32.xlu0 %v540, 112
    %v588 = vpop.permute.xlu0 %587
    %590 = vrot.lane.b32.xlu0 %v550, 16
    %v591 = vpop.permute.xlu0 %590
    %593 = vrot.lane.b32.xlu0 %v555, 32
    %v594 = vpop.permute.xlu0 %593
    %596 = vrot.lane.b32.xlu0 %v560, 48
    %v597 = vpop.permute.xlu0 %596
    %v599 = vsel %vm37, %v588, %v545
    %v600 = vsel %vm580, %v599, %v591
    %v601 = vsel %vm582, %v600, %v594
    %v602 = vsel %vm584, %v601, %v597
    %604 = vset.pattern.permute.xlu0 0
    %605 = vperm.xlu0 %604, %v457
    %v606 = vpop.permute.xlu0 %605
    %vm608 = vcmask 654336
    %v610 = vsel %vm608, %v585, 0
    %v613 = vsel %vm608, %v602, 0
    %615 = vmatprep.subr.mxu0 0.0
    %616 = vmatpush1.msra.mxu0 0.0
    %617 = vmatprep.subr.mxu0 0.0
    %618 = vmatpush1.msra.mxu0 0.0
    %619 = vmatprep.subr.mxu0 0.0
    %620 = vmatpush1.msra.mxu0 0.0
    %621 = vmatprep.subr.mxu0 0.0
    %622 = vmatpush1.msra.mxu0 0.0
    %623 = vmatprep.subr.mxu0 0.0
    %624 = vmatpush1.msra.mxu0 0.0
    %625 = vmatprep.subr.mxu0 0.0
    %626 = vmatpush1.msra.mxu0 0.0
    %627 = vmatprep.subr.mxu0 0.0
    %628 = vmatpush1.msra.mxu0 %v456
    %629 = vmatprep.subr.mxu0 0.0
    %630 = vmatpush1.msra.mxu0 %v455
    %631 = vmatprep.subr.mxu0 0.0
    %632 = vmatpush1.msra.mxu0 %v454
    %633 = vmatprep.subr.mxu0 0.0
    %634 = vmatpush1.msra.mxu0 %v453
    %635 = vmatprep.subr.mxu0 0.0
    %636 = vmatpush1.msra.mxu0 %v452
    %637 = vmatprep.subr.mxu0 0.0
    %638 = vmatpush1.msra.mxu0 %v451
    %639 = vmatprep.subr.mxu0 0.0
    %640 = vmatpush1.msra.mxu0 %v450
    %641 = vmatprep.subr.mxu0 0.0
    %642 = vmatpush1.msra.mxu0 %v449
    %643 = vmatprep.subr.mxu0 0.0
    %644 = vmatpush1.msra.mxu0 %v448
    %645 = vmatprep.subr.mxu0 0.0
    %646 = vmatpush1.msra.mxu0 %v447
    %647 = vmatprep.subr.mxu0 0.0
    %648 = vmatpush2.msra.mxu0 0.0
    %649 = vmatprep.subr.mxu0 0.0
    %650 = vmatpush2.msra.mxu0 0.0
    %651 = vmatprep.subr.mxu0 0.0
    %652 = vmatpush2.msra.mxu0 0.0
    %653 = vmatprep.subr.mxu0 0.0
    %654 = vmatpush2.msra.mxu0 0.0
    %655 = vmatprep.subr.mxu0 0.0
    %656 = vmatpush2.msra.mxu0 0.0
    %657 = vmatprep.subr.mxu0 0.0
    %658 = vmatpush2.msra.mxu0 0.0
    %659 = vmatprep.subr.mxu0 0.0
    %660 = vmatpush2.msra.mxu0 0.0
    %661 = vmatprep.subr.mxu0 0.0
    %662 = vmatpush2.msra.mxu0 0.0
    %663 = vmatprep.subr.mxu0 0.0
    %664 = vmatpush2.msra.mxu0 0.0
    %665 = vmatprep.subr.mxu0 0.0
    %666 = vmatpush2.msra.mxu0 0.0
    %667 = vmatprep.subr.mxu0 0.0
    %668 = vmatpush2.msra.mxu0 0.0
    %669 = vmatprep.subr.mxu0 0.0
    %670 = vmatpush2.msra.mxu0 0.0
    %671 = vmatprep.subr.mxu0 0.0
    %672 = vmatpush2.msra.mxu0 0.0
    %673 = vmatprep.subr.mxu0 0.0
    %674 = vmatpush2.msra.mxu0 0.0
    %675 = vmatprep.subr.mxu0 0.0
    %676 = vmatpush2.msra.mxu0 0.0
    %677 = vmatprep.subr.mxu0 0.0
    %678 = vmatpush2.msra.mxu0 0.0
    %679 = vmatprep.mubr.f32.mxu0 0.0
    %680 = vmatmul.mubr.f32.gmra.mxu0 %v610
    %v681 = vpop.f32.mrf.mxu0
    %v682 = vadd.f32 %v606, %v681
    %v683 = vpop.f32.mrf.mxu0
    %684 = vmatprep.mubr.f32.mxu0 0.0
    %685 = vmatmul.mubr.f32.gmra.mxu0 %v613
    %v686 = vpop.f32.mrf.mxu0
    %v687 = vadd.f32 %v606, %v686
    %v688 = vpop.f32.mrf.mxu0
    %689 = vdwg.mxu0
    %v691 = vrot.slane %v682, 1
    %692 = vrot.lane.b32.xlu0 %v691, 32
    %v693 = vpop.permute.xlu0 %692
    %v695 = vrot.slane %v682, 2
    %696 = vrot.lane.b32.xlu0 %v695, 64
    %v697 = vpop.permute.xlu0 %696
    %v699 = vrot.slane %v682, 3
    %700 = vrot.lane.b32.xlu0 %v699, 96
    %v701 = vpop.permute.xlu0 %700
    %v703 = vsel %vm580, %v682, %v693
    %v704 = vsel %vm584, %v703, %v697
    %vm705 = vcmask 785408
    %v706 = vsel %vm705, %v704, %v701
    %v708 = vrot.slane %v687, 1
    %709 = vrot.lane.b32.xlu0 %v708, 32
    %v710 = vpop.permute.xlu0 %709
    %v712 = vrot.slane %v687, 2
    %713 = vrot.lane.b32.xlu0 %v712, 64
    %v714 = vpop.permute.xlu0 %713
    %v716 = vrot.slane %v687, 3
    %717 = vrot.lane.b32.xlu0 %v716, 96
    %v718 = vpop.permute.xlu0 %717
    %v720 = vsel %vm580, %v687, %v710
    %v721 = vsel %vm584, %v720, %v714
    %v722 = vsel %vm705, %v721, %v718
    %v724 = vrot.slane %v722, 7
    %vm726 = vcmask 1040384
    %v727 = vsel %vm726, %v706, %v724
    %728 = vst [vmem:[#allocation2] sm:$0x3] %v727
    // Predicated region
    $region26: #{tpu_custom_call.1} parent=1 // pred_check
      _
    $region27: #{tpu_custom_call.1} parent=1 // pred_check_branch
      %730 = sbr.rel (0) target = $region29
    $region28: #{tpu_custom_call.1} parent=1 // pred_region
      %s732 = ssub.s32 32, 32
      %733 = vsyncadd [#allocation3], %s732
      %s735 = sshll.u32 [#allocation2], 4
      %s736 = int_to_ptr.vmem [resolvable:$true] %s735
      %738 = dma.vmem_to_hbm [thread:$0]  %s736, 32, %s6, [#allocation3]
    $region29: #{tpu_custom_call.1} parent=1 // pred_fallthru
      _
    // Predicated region
    $region30: #{tpu_custom_call.1} parent=1 // pred_check
      _
    $region31: #{tpu_custom_call.1} parent=1 // pred_check_branch
      %740 = sbr.rel (0) target = $region33
    $region32: #{tpu_custom_call.1} parent=1 // pred_region
      %741 = dma.done [#allocation3], 32
    $region33: #{tpu_custom_call.1} parent=1 // pred_fallthru
      _
    %742 = vsyncpa [#allocation3], 1

</llo_original>
